<compile_context>
chip_gen: v6e
topology: v6e:2x2x1
jax: 0.10.0
libtpu: 0.0.40
codegen_flags: <defaults>
</compile_context>

<pallas_src>
import functools

import jax
import jax.numpy as jnp
from jax.experimental import pallas as pl
from jax.experimental.pallas import tpu as pltpu


def _round_up(x, m):
    return ((x + m - 1) // m) * m


def _focal_loss_kernel(logits_ref, target_ref, acc_ref, *, gamma):
    n = pl.program_id(0)
    l = pl.program_id(1)

    @pl.when((n == 0) & (l == 0))
    def _():
        acc_ref[...] = jnp.zeros_like(acc_ref)

    x = logits_ref[...].astype(jnp.float32)      # (C, TL): classes on sublanes, pixels on lanes
    t = target_ref[...]                          # (1, TL) int32
    C = x.shape[0]

    # Softmax statistics over the class (sublane) axis — the only full-size EUP pass.
    m = jnp.max(x, axis=0, keepdims=True)        # (1, TL)
    ex = jnp.exp(x - m)                          # (C, TL)
    denom = jnp.sum(ex, axis=0, keepdims=True)   # (1, TL)
    log_denom = jnp.log(denom)                   # (1, TL)

    # one_hot(target, C+1)[:, 1:]  <=>  (target == class_index + 1)
    cls = jax.lax.broadcasted_iota(jnp.int32, x.shape, 0)
    onehot = t == (cls + 1)                      # (C, TL) bool

    # Select the target-class logit with a cheap masked sublane reduce, then do
    # the focal/CE math on one value per pixel instead of C.
    x_sel = jnp.sum(jnp.where(onehot, x, 0.0), axis=0, keepdims=True)   # (1, TL)
    logp_sel = (x_sel - m) - log_denom                                  # log_softmax @ target
    p_sel = jnp.exp(logp_sel)                                           # softmax @ target

    f = 1.0 - p_sel
    g = float(gamma)
    if g == int(g) and 0 <= int(g) <= 8:
        gi = int(g)
        if gi == 0:
            focal = jnp.ones_like(f)
        else:
            focal = f
            for _ in range(gi - 1):
                focal = focal * f
    else:
        focal = jnp.maximum(f, 0.0) ** g

    is_fg = (t >= 1) & (t <= C)                  # background / OOB contribute nothing
    loss_px = jnp.where(is_fg, focal * (-logp_sel), 0.0)   # (1, TL)

    acc_ref[...] += loss_px


def focal_loss(pred_logits, target, *, num_classes, gamma=2.0,
               max_block_bytes=4 * 1024 * 1024):
    """pred_logits: (N, C, H, W) float; target: (N, H, W) int in [0, num_classes]."""
    N, C, H, W = pred_logits.shape
    assert C == num_classes
    L = H * W

    # Native NCHW already has classes-on-sublane / pixels-on-lane once flattened
    # to (N, C, H*W): pure reshape, no HBM transpose round trip.
    x = pred_logits.reshape(N, C, L)
    t = target.reshape(N, 1, L).astype(jnp.int32)

    # Lane-dense tiles sized against a per-block VMEM budget (multiple of 128).
    tl = max(128, (max_block_bytes // (4 * C)) // 128 * 128)
    tile_l = min(tl, _round_up(L, 128))
    L_pad = _round_up(L, tile_l)
    if L_pad != L:
        # Padded pixels get target=0 (dropped background) -> zero contribution.
        x = jnp.pad(x, ((0, 0), (0, 0), (0, L_pad - L)))
        t = jnp.pad(t, ((0, 0), (0, 0), (0, L_pad - L)))
    n_ltiles = L_pad // tile_l

    acc = pl.pallas_call(
        functools.partial(_focal_loss_kernel, gamma=gamma),
        out_shape=jax.ShapeDtypeStruct((1, tile_l), jnp.float32),
        grid_spec=pltpu.PrefetchScalarGridSpec(
            num_scalar_prefetch=0,
            grid=(N, n_ltiles),
            in_specs=[
                pl.BlockSpec((None, C, tile_l), lambda n, l: (n, 0, l)),
                pl.BlockSpec((None, 1, tile_l), lambda n, l: (n, 0, l)),
            ],
            # Resident lane-dense accumulator: same block for every grid step.
            out_specs=pl.BlockSpec((1, tile_l), lambda n, l: (0, 0)),
        ),
        compiler_params=pltpu.CompilerParams(
            dimension_semantics=("arbitrary", "arbitrary"),
            vmem_limit_bytes=32 * 1024 * 1024,
        ),
    )(x, t)

    # Final tiny reduce-to-scalar + normalization outside the hot loop.
    return jnp.sum(acc) / float(H * W)


def _focal_loss_ref(pred_logits, target, *, num_classes, gamma=2.0):
    """Pure-JAX reference mirroring the PyTorch forward exactly."""
    p = jax.nn.softmax(pred_logits, axis=1)
    logp = jax.nn.log_softmax(pred_logits, axis=1)
    onehot = jax.nn.one_hot(target, num_classes + 1, dtype=jnp.float32)  # (N,H,W,C+1)
    onehot = jnp.transpose(onehot, (0, 3, 1, 2))[:, 1:]                  # (N,C,H,W)
    ce = -onehot * logp
    focal = (1.0 - p) ** gamma
    loss = focal * ce
    H, W = pred_logits.shape[-2:]
    return jnp.sum(loss) / (H * W)


if __name__ == "__main__":
    num_classes = 4
    gamma = 2.0
    N, C, H, W = 2, num_classes, 16, 16

    key = jax.random.PRNGKey(0)
    k1, k2 = jax.random.split(key)
    pred_logits = jax.random.normal(k1, (N, C, H, W), dtype=jnp.float32)
    # targets in [0, num_classes]; 0 is the dropped background class
    target = jax.random.randint(k2, (N, H, W), 0, num_classes + 1, dtype=jnp.int32)

    loss = focal_loss(pred_logits, target, num_classes=num_classes, gamma=gamma)
    loss = jax.block_until_ready(loss)

    ref = _focal_loss_ref(pred_logits, target, num_classes=num_classes, gamma=gamma)
    assert jnp.allclose(loss, ref, rtol=1e-4, atol=1e-5), (loss, ref)

    print("KERNEL_OK")
</pallas_src>

<mosaic_0001>
module attributes {stable_mosaic.version = 11 : i64} {
  func.func @_focal_loss_kernel(%arg0: i32, %arg1: i32, %arg2: memref<1x4x256xf32, #tpu.memory_space<vmem>>, %arg3: memref<1x1x256xi32, #tpu.memory_space<vmem>>, %arg4: memref<1x256xf32, #tpu.memory_space<vmem>>) attributes {dimension_semantics = [#tpu.dimension_semantics<arbitrary>, #tpu.dimension_semantics<arbitrary>], iteration_bounds = array<i64: 2, 1>, scalar_prefetch = 0 : i64, scratch_operands = 0 : i64, tpu.core_type = #tpu.core_type<tc>, window_params = [{transform_indices = @transform_0, window_bounds = array<i64: 1, 4, 256>}, {transform_indices = @transform_1, window_bounds = array<i64: 1, 1, 256>}, {pipeline_mode = #tpu.pipeline_mode<synchronous>, transform_indices = @transform_2, window_bounds = array<i64: 1, 256>}]} {
    %c0_i32 = arith.constant 0 : i32
    %0 = arith.cmpi eq, %arg0, %c0_i32 : i32
    %c0_i32_0 = arith.constant 0 : i32
    %1 = arith.cmpi eq, %arg1, %c0_i32_0 : i32
    %2 = arith.andi %0, %1 : i1
    %3 = arith.extui %2 : i1 to i32
    %c0_i32_1 = arith.constant 0 : i32
    %4 = arith.cmpi ne, %3, %c0_i32_1 : i32
    scf.if %4 {
      %cst_18 = arith.constant 0.000000e+00 : f32
      %45 = vector.broadcast %cst_18 : f32 to vector<1x256xf32>
      %c0_19 = arith.constant 0 : index
      %c0_20 = arith.constant 0 : index
      %46 = vector.load %arg4[%c0_19, %c0_20] : memref<1x256xf32, #tpu.memory_space<vmem>>, vector<1x256xf32>
      tpu.vector_store %arg4[%c0_19, %c0_20], %45 {strides = array<i32>} : memref<1x256xf32, #tpu.memory_space<vmem>>, vector<1x256xf32>,
    } else {
    }
    %c0 = arith.constant 0 : index
    %c0_2 = arith.constant 0 : index
    %c0_3 = arith.constant 0 : index
    %5 = vector.load %arg2[%c0, %c0_2, %c0_3] : memref<1x4x256xf32, #tpu.memory_space<vmem>>, vector<1x4x256xf32>
    %6 = vector.shape_cast %5 : vector<1x4x256xf32> to vector<4x256xf32>
    %c0_4 = arith.constant 0 : index
    %c0_5 = arith.constant 0 : index
    %c0_6 = arith.constant 0 : index
    %7 = vector.load %arg3[%c0_4, %c0_5, %c0_6] : memref<1x1x256xi32, #tpu.memory_space<vmem>>, vector<1x1x256xi32>
    %8 = vector.shape_cast %7 : vector<1x1x256xi32> to vector<1x256xi32>
    %cst = arith.constant dense<0xFF800000> : vector<256xf32>
    %9 = vector.multi_reduction <maximumf>, %6, %cst [0] : vector<4x256xf32> to vector<256xf32>
    %10 = vector.shape_cast %9 : vector<256xf32> to vector<1x256xf32>
    %11 = vector.broadcast %10 : vector<1x256xf32> to vector<4x256xf32>
    %12 = arith.subf %6, %11 : vector<4x256xf32>
    %13 = math.exp %12 : vector<4x256xf32>
    %cst_7 = arith.constant dense<0.000000e+00> : vector<256xf32>
    %14 = vector.multi_reduction <add>, %13, %cst_7 [0] : vector<4x256xf32> to vector<256xf32>
    %15 = vector.shape_cast %14 : vector<256xf32> to vector<1x256xf32>
    %16 = math.log %15 : vector<1x256xf32>
    %17 = tpu.iota {dimensions = array<i32: 0>} : vector<4x256xi32>
    %c1_i32 = arith.constant 1 : i32
    %18 = vector.broadcast %c1_i32 : i32 to vector<4x256xi32>
    %19 = arith.addi %17, %18 : vector<4x256xi32>
    %20 = vector.broadcast %8 : vector<1x256xi32> to vector<4x256xi32>
    %21 = arith.cmpi eq, %20, %19 : vector<4x256xi32>
    %cst_8 = arith.constant 0.000000e+00 : f32
    %22 = vector.broadcast %cst_8 : f32 to vector<4x256xf32>
    %23 = arith.select %21, %6, %22 : vector<4x256xi1>, vector<4x256xf32>
    %cst_9 = arith.constant dense<0.000000e+00> : vector<256xf32>
    %24 = vector.multi_reduction <add>, %23, %cst_9 [0] : vector<4x256xf32> to vector<256xf32>
    %25 = vector.shape_cast %24 : vector<256xf32> to vector<1x256xf32>
    %26 = arith.subf %25, %10 : vector<1x256xf32>
    %27 = arith.subf %26, %16 : vector<1x256xf32>
    %28 = math.exp %27 : vector<1x256xf32>
    %cst_10 = arith.constant 1.000000e+00 : f32
    %29 = vector.broadcast %cst_10 : f32 to vector<1x256xf32>
    %30 = arith.subf %29, %28 : vector<1x256xf32>
    %31 = arith.mulf %30, %30 : vector<1x256xf32>
    %c1_i32_11 = arith.constant 1 : i32
    %32 = vector.broadcast %c1_i32_11 : i32 to vector<1x256xi32>
    %33 = arith.cmpi sge, %8, %32 : vector<1x256xi32>
    %c4_i32 = arith.constant 4 : i32
    %34 = vector.broadcast %c4_i32 : i32 to vector<1x256xi32>
    %35 = arith.cmpi sle, %8, %34 : vector<1x256xi32>
    %36 = arith.andi %33, %35 : vector<1x256xi1>
    %cst_12 = arith.constant 0.000000e+00 : f32
    %37 = vector.broadcast %cst_12 : f32 to vector<1x256xf32>
    %38 = arith.subf %37, %27 : vector<1x256xf32>
    %39 = arith.mulf %31, %38 : vector<1x256xf32>
    %cst_13 = arith.constant 0.000000e+00 : f32
    %40 = vector.broadcast %cst_13 : f32 to vector<1x256xf32>
    %41 = arith.select %36, %39, %40 : vector<1x256xi1>, vector<1x256xf32>
    %c0_14 = arith.constant 0 : index
    %c0_15 = arith.constant 0 : index
    %42 = vector.load %arg4[%c0_14, %c0_15] : memref<1x256xf32, #tpu.memory_space<vmem>>, vector<1x256xf32>
    %43 = arith.addf %42, %41 : vector<1x256xf32>
    %c0_16 = arith.constant 0 : index
    %c0_17 = arith.constant 0 : index
    %44 = vector.load %arg4[%c0_16, %c0_17] : memref<1x256xf32, #tpu.memory_space<vmem>>, vector<1x256xf32>
    tpu.vector_store %arg4[%c0_16, %c0_17], %43 {strides = array<i32>} : memref<1x256xf32, #tpu.memory_space<vmem>>, vector<1x256xf32>,
    return
  }
  func.func @transform_0(%arg0: i32, %arg1: i32) -> (i32, i32, i32) {
    %c0_i32 = arith.constant 0 : i32
    %c0_i32_0 = arith.constant 0 : i32
    return %arg0, %c0_i32, %arg1 : i32, i32, i32
  }
  func.func @transform_1(%arg0: i32, %arg1: i32) -> (i32, i32, i32) {
    %c0_i32 = arith.constant 0 : i32
    %c0_i32_0 = arith.constant 0 : i32
    return %arg0, %c0_i32, %arg1 : i32, i32, i32
  }
  func.func @transform_2(%arg0: i32, %arg1: i32) -> (i32, i32) {
    %c0_i32 = arith.constant 0 : i32
    %c0_i32_0 = arith.constant 0 : i32
    %c0_i32_1 = arith.constant 0 : i32
    return %c0_i32, %c0_i32_0 : i32, i32
  }
}

</mosaic_0001>

<llo_original>
// kernel: tpu_custom_call.1
$region0: #{tpu_custom_call.1}
  #allocation0 [shape = 'u32[]', space=smem, size = 0x4, offset = 0x4, fixed_abs, tag = 'smem constant byte address 0x4 - core index']
  #allocation1 [shape = 'u32[144,128]{1,0:T(1,128)}', space=vmem, size = 0x12000, scoped, tag = 'internal scratch']
  %s0 = inlined_call_operand.hbm [shape: f32[2,4,256], index: 0, kind: input, shape index: {}]
  %s1 = inlined_call_operand.hbm [shape: s32[2,1,256], index: 1, kind: input, shape index: {}]
  %s2 = inlined_call_operand.hbm [shape: f32[1,256], index: 2, kind: output, shape index: {}]
  %s3 = sld [smem:[#allocation0]]
  $region53: #{tpu_custom_call.1} parent=0
    _
  %s5 = ssub.s32 1, %s3
  %s6 = scalar_select 0, %s5, %s3
  $region1: #{tpu_custom_call.1} parent=0
    #allocation2 [shape = 'u8[8192]{0}', space=vmem, size = 0x2000, scoped, tag = 'input window, operand 0']
    #allocation3 [shape = 's32[2]{0}', space=sflag, size = 0x8, scoped, tag = 'scoped memory for tpu_custom_call.1']
    #allocation4 [shape = 's32[2]{0}', space=sflag, size = 0x8, scoped, tag = 'scoped memory for tpu_custom_call.1']
    #allocation5 [shape = 'u8[2048]{0}', space=vmem, size = 0x800, scoped, tag = 'input window, operand 1']
    #allocation6 [shape = 's32[2]{0}', space=sflag, size = 0x8, scoped, tag = 'scoped memory for tpu_custom_call.1']
    #allocation7 [shape = 'u8[1024]{0}', space=vmem, size = 0x400, scoped, tag = 'output window, operand 0, single buffered']
    %7 = vsyncpa [#allocation3], 0
    %s8 = scalar_lea.sflag [#allocation3], 1
    %9 = vsyncpa %s8, 0
    %10 = vsyncpa [#allocation6], 0
    %s11 = scalar_lea.sflag [#allocation6], 1
    %12 = vsyncpa %s11, 0
    %13 = vsyncpa [#allocation4], 0
    loop: start=0, step=1, limit=4
    $region2: #{tpu_custom_call.1} parent=1 // loop_pre_header
      _
    $region3: #{tpu_custom_call.1} parent=1 // loop_header
      %s15 = sphi 0, %s19
      %p16 = scmp.ge.s32.totalorder %s15, 4
      %s22 = sphi 0, %s34
      %s23 = sphi 0, %s30
      %s24 = sphi 0, %s22
      %s25 = sphi 0, %s23
      %s26 = sphi 0, %s24
      %s27 = sphi 0, %s25
      %s39 = sphi 0, %s41
      %s42 = sphi 0, %s39
      %s43 = sphi 0, %s42
      %s59 = sphi 0, %s43
      %s67 = sphi 0, %s69
      %s70 = sphi 0, %s67
      %s71 = sphi 0, %s70
      %s87 = sphi 0, %s71
      %s91 = sphi 0, %s91
      %s93 = sphi 0, %s91
      %s94 = sphi 0, %s93
      %s108 = sphi 0, %s94
    $region4: #{tpu_custom_call.1} parent=1 // loop_header_branch
      %18 = sbr.rel (%p16) target = $region8
    $region5: #{tpu_custom_call.1} parent=1 // loop_body
      %s20 = ssub.s32 %s15, 1
      %s21 = ssub.s32 %s15, 2
      %s28 = sadd.s32 1, %s23
      %p29 = scmp.ge.s32.totalorder %s28, 1
      %s30 = scalar_select %p29, 0, %s28
      %s31 = sadd.s32 1, %s22
      %s32 = scalar_select %p29, %s31, %s22
      %p33 = scmp.ge.s32.totalorder %s32, 2
      %s34 = scalar_select %p33, 0, %s32
      %s35 = ssub.s32 %s22, %s34
      %s36 = ssub.s32 %s23, %s30
      %s37 = sor.u32 %s35, %s36
      %p38 = scmp.eq.s32.totalorder %s37, 0
      %s40 = sadd.s32 %s39, 1
      %s41 = scalar_select %p38, %s39, %s40
      %p44 = pneg %p38
      %p45 = scmp.eq.s32.totalorder %s15, 1
      %p46 = por %p44, %p45
      %p47 = scmp.ne.s32.totalorder %s39, %s42
      %p48 = scmp.eq.s32.totalorder %s15, 0
      %p49 = por %p47, %p48
      %p50 = scmp.ne.s32.totalorder %s39, %s42
      %p51 = scmp.eq.s32.totalorder %s20, 1
      %p52 = por %p50, %p51
      %p53 = scmp.ne.s32.totalorder %s42, %s43
      %p54 = scmp.eq.s32.totalorder %s20, 0
      %p55 = por %p53, %p54
      %p56 = scmp.ne.s32.totalorder %s42, %s43
      %p57 = scmp.eq.s32.totalorder %s21, 1
      %p58 = por %p56, %p57
      %p60 = scmp.ne.s32.totalorder %s43, %s59
      %p61 = scmp.eq.s32.totalorder %s21, 0
      %p62 = por %p60, %p61
      %s63 = ssub.s32 %s22, %s34
      %s64 = ssub.s32 %s23, %s30
      %s65 = sor.u32 %s63, %s64
      %p66 = scmp.eq.s32.totalorder %s65, 0
      %s68 = sadd.s32 %s67, 1
      %s69 = scalar_select %p66, %s67, %s68
      %p72 = pneg %p66
      %p73 = scmp.eq.s32.totalorder %s15, 1
      %p74 = por %p72, %p73
      %p75 = scmp.ne.s32.totalorder %s67, %s70
      %p76 = scmp.eq.s32.totalorder %s15, 0
      %p77 = por %p75, %p76
      %p78 = scmp.ne.s32.totalorder %s67, %s70
      %p79 = scmp.eq.s32.totalorder %s20, 1
      %p80 = por %p78, %p79
      %p81 = scmp.ne.s32.totalorder %s70, %s71
      %p82 = scmp.eq.s32.totalorder %s20, 0
      %p83 = por %p81, %p82
      %p84 = scmp.ne.s32.totalorder %s70, %s71
      %p85 = scmp.eq.s32.totalorder %s21, 1
      %p86 = por %p84, %p85
      %p88 = scmp.ne.s32.totalorder %s71, %s87
      %p89 = scmp.eq.s32.totalorder %s21, 0
      %p90 = por %p88, %p89
      %s92 = sadd.s32 %s91, 1
      %p95 = scmp.eq.s32.totalorder %s15, 1
      %p96 = scmp.ne.s32.totalorder %s91, %s93
      %p97 = scmp.eq.s32.totalorder %s15, 0
      %p98 = por %p96, %p97
      %p99 = scmp.ne.s32.totalorder %s91, %s93
      %p100 = scmp.eq.s32.totalorder %s20, 1
      %p101 = por %p99, %p100
      %p102 = scmp.ne.s32.totalorder %s93, %s94
      %p103 = scmp.eq.s32.totalorder %s20, 0
      %p104 = por %p102, %p103
      %p105 = scmp.ne.s32.totalorder %s93, %s94
      %p106 = scmp.eq.s32.totalorder %s21, 1
      %p107 = por %p105, %p106
      %p109 = scmp.ne.s32.totalorder %s94, %s108
      %p110 = scmp.eq.s32.totalorder %s21, 0
      %p111 = por %p109, %p110
      %p112 = scmp.le.s32.totalorder 1, %s15
      %p113 = scmp.lt.s32.totalorder %s15, 3
      %p114 = pnand %p112, %p113
      %p115 = pneg %p114
      // Predicated region
      $region9: #{tpu_custom_call.1} parent=5 // pred_check
        _
      $region10: #{tpu_custom_call.1} parent=5 // pred_check_branch
        %117 = sbr.rel (%p114) target = $region12
      $region11: #{tpu_custom_call.1} parent=5 // pred_region
        %s118 = ssub.s32 %s15, 1
      $region12: #{tpu_custom_call.1} parent=5 // pred_fallthru
        _
      %p119 = scmp.lt.s32.totalorder %s15, 2
      // Predicated region
      $region13: #{tpu_custom_call.1} parent=5 // pred_check
        %p120 = pneg %p119
      $region14: #{tpu_custom_call.1} parent=5 // pred_check_branch
        %122 = sbr.rel (%p120) target = $region16
      $region15: #{tpu_custom_call.1} parent=5 // pred_region
        // Predicated region
        $region17: #{tpu_custom_call.1} parent=15 // pred_check
          %p123 = pneg %p49
        $region18: #{tpu_custom_call.1} parent=15 // pred_check_branch
          %125 = sbr.rel (%p123) target = $region20
        $region19: #{tpu_custom_call.1} parent=15 // pred_region
          %s126 = sand.u32 %s39, 1
          %s127 = scalar_lea.sflag [#allocation3], %s126
          %s128 = sand.u32 %s39, 1
          %s129 = smul.addr %s128, 8
          %s130 = scalar_lea.vmem [#allocation2], %s129
          %s131 = smul.u32 2, %s23
          %s133 = ssub.s32 128, 128
          %134 = vsyncadd %s127, %s133
          %s135 = smul.addr %s22, 2
          %s136 = sadd.s32 %s131, %s135
          %s137 = smul.addr %s136, 64
          %s138 = scalar_lea.hbm %s0, %s137
          %s140 = sshll.u32 %s130, 4
          %s141 = int_to_ptr.vmem [resolvable:$true] %s140
          %143 = dma.hbm_to_vmem [thread:$0]  %s138, 128, %s141, %s127
        $region20: #{tpu_custom_call.1} parent=15 // pred_fallthru
          _
        // Predicated region
        $region21: #{tpu_custom_call.1} parent=15 // pred_check
          %p144 = pneg %p77
        $region22: #{tpu_custom_call.1} parent=15 // pred_check_branch
          %146 = sbr.rel (%p144) target = $region24
        $region23: #{tpu_custom_call.1} parent=15 // pred_region
          %s147 = sand.u32 %s67, 1
          %s148 = scalar_lea.sflag [#allocation6], %s147
          %s149 = sand.u32 %s67, 1
          %s150 = smul.addr %s149, 2
          %s151 = scalar_lea.vmem [#allocation5], %s150
          %s152 = smul.u32 2, %s23
          %s154 = ssub.s32 32, 32
          %155 = vsyncadd %s148, %s154
          %s156 = smul.addr %s22, 2
          %s157 = sadd.s32 %s152, %s156
          %s158 = smul.addr %s157, 16
          %s159 = scalar_lea.hbm %s1, %s158
          %s161 = sshll.u32 %s151, 4
          %s162 = int_to_ptr.vmem [resolvable:$true] %s161
          %164 = dma.hbm_to_vmem [thread:$0]  %s159, 32, %s162, %s148
        $region24: #{tpu_custom_call.1} parent=15 // pred_fallthru
          _
      $region16: #{tpu_custom_call.1} parent=5 // pred_fallthru
        _
      %p165 = scmp.le.s32.totalorder 1, %s15
      %p166 = scmp.lt.s32.totalorder %s15, 3
      %p167 = pnand %p165, %p166
      %p168 = pneg %p167
      // Predicated region
      $region25: #{tpu_custom_call.1} parent=5 // pred_check
        _
      $region26: #{tpu_custom_call.1} parent=5 // pred_check_branch
        %170 = sbr.rel (%p167) target = $region28
      $region27: #{tpu_custom_call.1} parent=5 // pred_region
        %s171 = ssub.s32 %s15, 1
        %s172 = sand.u32 %s42, 1
        %s173 = scalar_lea.sflag [#allocation3], %s172
        %s174 = sand.u32 %s42, 1
        %s175 = smul.addr %s174, 8
        %s176 = scalar_lea.vmem [#allocation2], %s175
        // Predicated region
        $region29: #{tpu_custom_call.1} parent=27 // pred_check
          %p177 = pneg %p55
        $region30: #{tpu_custom_call.1} parent=27 // pred_check_branch
          %179 = sbr.rel (%p177) target = $region32
        $region31: #{tpu_custom_call.1} parent=27 // pred_region
          %180 = dma.done %s173, 128
        $region32: #{tpu_custom_call.1} parent=27 // pred_fallthru
          _
        %s181 = sand.u32 %s70, 1
        %s182 = scalar_lea.sflag [#allocation6], %s181
        %s183 = sand.u32 %s70, 1
        %s184 = smul.addr %s183, 2
        %s185 = scalar_lea.vmem [#allocation5], %s184
        // Predicated region
        $region33: #{tpu_custom_call.1} parent=27 // pred_check
          %p186 = pneg %p83
        $region34: #{tpu_custom_call.1} parent=27 // pred_check_branch
          %188 = sbr.rel (%p186) target = $region36
        $region35: #{tpu_custom_call.1} parent=27 // pred_region
          %189 = dma.done %s182, 32
        $region36: #{tpu_custom_call.1} parent=27 // pred_fallthru
          _
        %s190 = sand.u32 %s42, 1
        %s191 = scalar_lea.sflag [#allocation3], %s190
        %s192 = sand.u32 %s42, 1
        %s193 = smul.addr %s192, 8
        %s194 = scalar_lea.vmem [#allocation2], %s193
        %p195 = pneg %p55
        %p196 = pneg %p52
        %s197 = sand.u32 %s70, 1
        %s198 = scalar_lea.sflag [#allocation6], %s197
        %s199 = sand.u32 %s70, 1
        %s200 = smul.addr %s199, 2
        %s201 = scalar_lea.vmem [#allocation5], %s200
        %p202 = pneg %p83
        %p203 = pneg %p80
        %p204 = pneg %p104
        %p205 = pneg %p101
        %s206 = smul.u32 2, %s25
        %s207 = smul.u32 2, %s25
        %p208 = scmp.eq.s32.totalorder %s24, 0
        %p209 = scmp.eq.s32.totalorder %s25, 0
        %p210 = pnand %p208, %p209
        %p211 = pneg %p210
        // Predicated region
        $region37: #{tpu_custom_call.1} parent=27 // pred_check
          _
        $region38: #{tpu_custom_call.1} parent=27 // pred_check_branch
          %213 = sbr.rel (%p210) target = $region40
        $region39: #{tpu_custom_call.1} parent=27 // pred_region
          %v214 = vlaneseq
          %vm215 = vcmp.ge.s32.totalorder %v214, 0
          %vm216 = vcmp.lt.s32.totalorder %v214, 256
          %vm217 = vmand %vm215, %vm216
          %218 = vst.msk [vmem:[#allocation7] sm:$0x3] %vm217, 0.0
        $region40: #{tpu_custom_call.1} parent=27 // pred_fallthru
          _
        %v219 = vld [vmem:[%s176] sm:$0xff]
        %v220 = vld [vmem:[%s185] sm:$0x3]
        %v222 = vcombine.high %v219, %v219
        %vm224 = vcmask 1043456
        %v225 = vsel %vm224, %v219, -inf
        %v226 = vrot.slane %v225, 4
        %v227 = vmax.f32 %v225, %v226
        %v228 = vrot.slane %v227, 2
        %v229 = vmax.f32 %v227, %v228
        %v230 = vrot.slane %v229, 1
        %v231 = vmax.f32 %v229, %v230
        %v232 = vsel %vm224, %v222, -inf
        %v233 = vrot.slane %v232, 4
        %v234 = vmax.f32 %v232, %v233
        %v235 = vrot.slane %v234, 2
        %v236 = vmax.f32 %v234, %v235
        %v237 = vrot.slane %v236, 1
        %v238 = vmax.f32 %v236, %v237
        %v241 = vcombine.low %v231, %v238
        %v243 = vsub.f32 %v219, %v241
        %v244 = vmul.f32 %v243, 1.442695
        %v245 = vpow.pop %v244
        %v247 = vcombine.high %v245, %v245
        %v249 = vsel %vm224, %v245, 0.0
        %v250 = vrot.slane %v249, 4
        %v251 = vadd.f32 %v249, %v250
        %v252 = vrot.slane %v251, 2
        %v253 = vadd.f32 %v251, %v252
        %v254 = vrot.slane %v253, 1
        %v255 = vadd.f32 %v253, %v254
        %v256 = vsel %vm224, %v247, 0.0
        %v257 = vrot.slane %v256, 4
        %v258 = vadd.f32 %v256, %v257
        %v259 = vrot.slane %v258, 2
        %v260 = vadd.f32 %v258, %v259
        %v261 = vrot.slane %v260, 1
        %v262 = vadd.f32 %v260, %v261
        %v263 = vlog2.pop %v255
        %v264 = vmul.f32 %v263, 0.6931472
        %v265 = vlog2.pop %v262
        %v266 = vmul.f32 %v265, 0.6931472
        %v267 = vlaneseq
        %v268 = vshrl.u32 %v267, 7
        %v269 = vadd.s32 %v268, 1
        %v270 = vlaneseq
        %v271 = vshrl.u32 %v270, 7
        %v272 = vsub.s32 0, %v271
        %v273 = vrot.slane %v220, %v272
        %v274 = vlaneseq
        %v275 = vshrl.u32 %v274, 7
        %v276 = vsub.s32 1, %v275
        %v277 = vrot.slane %v220, %v276
        %vm278 = vcmp.eq.s32.totalorder %v273, %v269
        %vm279 = vcmp.eq.s32.totalorder %v277, %v269
        %v280 = vsel %vm278, %v219, 0.0
        %v281 = vsel %vm279, %v222, 0.0
        %v282 = vsel %vm224, %v280, 0.0
        %v283 = vrot.slane %v282, 4
        %v284 = vadd.f32 %v282, %v283
        %v285 = vrot.slane %v284, 2
        %v286 = vadd.f32 %v284, %v285
        %v287 = vrot.slane %v286, 1
        %v288 = vadd.f32 %v286, %v287
        %v289 = vsel %vm224, %v281, 0.0
        %v290 = vrot.slane %v289, 4
        %v291 = vadd.f32 %v289, %v290
        %v292 = vrot.slane %v291, 2
        %v293 = vadd.f32 %v291, %v292
        %v294 = vrot.slane %v293, 1
        %v295 = vadd.f32 %v293, %v294
        %v296 = vsub.f32 %v288, %v231
        %v297 = vsub.f32 %v295, %v238
        %v298 = vsub.f32 %v296, %v264
        %v299 = vsub.f32 %v297, %v266
        %v300 = vmul.f32 %v298, 1.442695
        %v301 = vpow.pop %v300
        %v302 = vmul.f32 %v299, 1.442695
        %v303 = vpow.pop %v302
        %v304 = vsub.f32 1.0, %v301
        %v305 = vsub.f32 1.0, %v303
        %v306 = vmul.f32 %v304, %v304
        %v307 = vmul.f32 %v305, %v305
        %vm308 = vcmp.ge.s32.totalorder %v220, 1
        %vm309 = vcmp.le.s32.totalorder %v220, 4
        %vm310 = vmand %vm308, %vm309
        %v311 = vsub.f32 0.0, %v298
        %v312 = vsub.f32 0.0, %v299
        %v313 = vmul.f32 %v306, %v311
        %v314 = vmul.f32 %v307, %v312
        %v317 = vcombine.low %v313, %v314
        %v319 = vunpack.c.l.s4 1966171168
        %v320 = vunpack.c.0.s8 %v319
        %v321 = vlaneseq
        %v322 = vshrl.u32 %v321, 7
        %v323 = vsub.s32 %v320, %v322
        %v324 = vrot.slane %v317, %v323
        %v326 = vunpack.c.l.s4 1966171168
        %v327 = vunpack.c.0.s8 %v326
        %v328 = vlaneseq
        %v329 = vshrl.u32 %v328, 7
        %v330 = vsub.s32 %v327, %v329
        %v331 = vrot.slane %v324, %v330
        %v333 = vsel %vm310, %v331, 0.0
        %v334 = vld [vmem:[#allocation7] sm:$0x3]
        %v335 = vadd.f32 %v334, %v333
        %v336 = vlaneseq
        %vm337 = vcmp.ge.s32.totalorder %v336, 0
        %vm338 = vcmp.lt.s32.totalorder %v336, 256
        %vm339 = vmand %vm337, %vm338
        %340 = vst.msk [vmem:[#allocation7] sm:$0x3] %vm339, %v335
        // Predicated region
        $region41: #{tpu_custom_call.1} parent=27 // pred_check
          %p341 = pneg %p101
        $region42: #{tpu_custom_call.1} parent=27 // pred_check_branch
          %343 = sbr.rel (%p341) target = $region44
        $region43: #{tpu_custom_call.1} parent=27 // pred_region
          %s345 = ssub.s32 32, 32
          %346 = vsyncadd [#allocation4], %s345
          %s348 = sshll.u32 [#allocation7], 4
          %s349 = int_to_ptr.vmem [resolvable:$true] %s348
          %351 = dma.vmem_to_hbm [thread:$0]  %s349, 32, %s2, [#allocation4]
        $region44: #{tpu_custom_call.1} parent=27 // pred_fallthru
          _
        // Predicated region
        $region45: #{tpu_custom_call.1} parent=27 // pred_check
          %p352 = pneg %p101
        $region46: #{tpu_custom_call.1} parent=27 // pred_check_branch
          %354 = sbr.rel (%p352) target = $region48
        $region47: #{tpu_custom_call.1} parent=27 // pred_region
          %355 = dma.done [#allocation4], 32
        $region48: #{tpu_custom_call.1} parent=27 // pred_fallthru
          _
      $region28: #{tpu_custom_call.1} parent=5 // pred_fallthru
        _
      %p356 = scmp.le.s32.totalorder 2, %s15
      // Predicated region
      $region49: #{tpu_custom_call.1} parent=5 // pred_check
        %p357 = pneg %p356
      $region50: #{tpu_custom_call.1} parent=5 // pred_check_branch
        %359 = sbr.rel (%p357) target = $region52
      $region51: #{tpu_custom_call.1} parent=5 // pred_region
        %s360 = ssub.s32 %s15, 2
      $region52: #{tpu_custom_call.1} parent=5 // pred_fallthru
        _
    $region6: #{tpu_custom_call.1} parent=1 // loop_footer
      %s19 = sadd.s32 1, %s15
    $region7: #{tpu_custom_call.1} parent=1 // loop_footer_branch
      %14 = sbr.rel target = $region3
    $region8: #{tpu_custom_call.1} parent=1 // loop_exit
      _
    %361 = vsyncpa [#allocation3], 1
    %s362 = scalar_lea.sflag [#allocation3], 1
    %363 = vsyncpa %s362, 1
    %364 = vsyncpa [#allocation6], 1
    %s365 = scalar_lea.sflag [#allocation6], 1
    %366 = vsyncpa %s365, 1
    %367 = vsyncpa [#allocation4], 1
    %s368 = scalar_lea.sflag [#allocation4], 1
    %369 = vsyncpa %s368, 1

</llo_original>
